<compile_context>
chip_gen: v5e
topology: v5e:2x2
jax: 0.10.0
libtpu: 0.0.40
codegen_flags: <defaults>
</compile_context>

<pallas_src>
import functools

import jax
import jax.numpy as jnp
from jax.experimental import pallas as pl
from jax.experimental.pallas import tpu as pltpu

_OFF = 8  # sublane-aligned interior row offset inside the halo scratch


def _round_up(x, m):
    return (x + m - 1) // m * m


def _pick_batch_tile(bsz, t, tpad, cp, cin0, num_layers):
    """Pick Bt: target ~1024 matmul rows per grid step, keep >= 2 grid steps
    when the batch allows (v7x has 2 TensorCores; cheap on v5e/v6e), and stay
    inside a conservative VMEM budget."""
    bt = max(1, min(bsz, 1024 // max(tpad, 1)))
    if bsz > 1:
        bt = min(bt, pl.cdiv(bsz, 2))

    def vmem_bytes(b):
        scratch = 2 * b * (tpad + 16) * cp * 2               # bf16 ping-pong
        io_blocks = 2 * b * t * (cin0 + cp) * 4              # double-buffered
        weights = 2 * num_layers * (3 * cp * cp * 2 + cp * 4)
        return scratch + io_blocks + weights

    budget = 40 << 20
    while bt > 1 and vmem_bytes(bt) > budget:
        bt = max(1, bt // 2)
    return bt, vmem_bytes(bt)


def _fused_cnn_kernel(x_ref, w_ref, b_ref, o_ref, buf_a, buf_b, *,
                      T, Tpad, Cp, cin0, num_layers):
    """All conv layers for one batch tile; activations resident in VMEM.

    x_ref : (Bt, T, cin0)            f32 input tile (unpadded channels)
    w_ref : (L*3, Cp, Cp)            bf16 per-tap weights, zero padded
    b_ref : (L, 1, Cp)               f32 bias, zero padded
    o_ref : (Bt, T, Cp)              f32 lane-dense output tile
    buf_a, buf_b : (Bt, Tpad+16, Cp) bf16 ping-pong scratch. Interior rows are
        [_OFF, _OFF+Tpad); the padding=1 halo rows are _OFF-1 and _OFF+T.
    """
    Bt = x_ref.shape[0]

    # Minimal zero-init. buf_a: both halo rows + the whole interior (covers
    # the padded channel columns [cin0:Cp) and any rows in [T, Tpad)).
    # buf_b: only its halo rows (its interior is fully overwritten by layer
    # 0's matmul output, padded weight columns write exact zeros there).
    buf_a[:, _OFF - 1:_OFF + Tpad + 1, :] = jnp.zeros(
        (Bt, Tpad + 2, Cp), jnp.bfloat16)
    if num_layers > 1:
        zrow = jnp.zeros((Bt, 1, Cp), jnp.bfloat16)
        buf_b[:, _OFF - 1:_OFF, :] = zrow
        buf_b[:, _OFF + T:_OFF + T + 1, :] = zrow
    buf_a[:, _OFF:_OFF + T, :cin0] = x_ref[...].astype(jnp.bfloat16)

    bufs = (buf_a, buf_b)
    # NOTE: the unrolled Python loop is fine for small num_layers (<= ~4);
    # for deeper stacks switch to lax.fori_loop over a (2, ...) scratch.
    for layer in range(num_layers):
        src = bufs[layer % 2]
        dst = bufs[(layer + 1) % 2]

        # One accumulated MXU matmul per tap (no im2col temp). Output row t
        # reads interior rows t-1, t, t+1; the halo rows provide padding=1.
        x0 = src[:, _OFF - 1:_OFF - 1 + Tpad, :].reshape(Bt * Tpad, Cp)
        x1 = src[:, _OFF:_OFF + Tpad, :].reshape(Bt * Tpad, Cp)
        x2 = src[:, _OFF + 1:_OFF + 1 + Tpad, :].reshape(Bt * Tpad, Cp)
        acc = jnp.dot(x0, w_ref[3 * layer + 0],
                      preferred_element_type=jnp.float32)
        acc = acc + jnp.dot(x1, w_ref[3 * layer + 1],
                            preferred_element_type=jnp.float32)
        acc = acc + jnp.dot(x2, w_ref[3 * layer + 2],
                            preferred_element_type=jnp.float32)
        acc = acc + b_ref[layer]                              # (1, Cp) bcast

        if layer != num_layers - 1:
            act = jnp.maximum(acc, 0.0)                       # ReLU (f32)
            dst[:, _OFF:_OFF + Tpad, :] = (
                act.reshape(Bt, Tpad, Cp).astype(jnp.bfloat16))
            if Tpad > T:
                # Restore the right halo row overwritten by the padded rows.
                dst[:, _OFF + T:_OFF + T + 1, :] = jnp.zeros(
                    (Bt, 1, Cp), jnp.bfloat16)
        else:
            out = acc.reshape(Bt, Tpad, Cp)                   # no ReLU on last
            o_ref[...] = out[:, :T, :].astype(o_ref.dtype)


def _pack_params(params, cin0, hid, cp):
    """Pack nn.Conv1d params into per-tap (cin, cout) slabs, zero-padded to cp.

    params[l] = (w, b) with w: (Cout, Cin, 3), b: (Cout,) (PyTorch layout).
    Returns w_fused: (L*3, cp, cp) bf16 with w_fused[3*l+k, cin, cout] =
    w[cout, cin, k], and b_fused: (L, 1, cp) f32.
    """
    num_layers = len(params)
    w_fused = jnp.zeros((num_layers, 3, cp, cp), jnp.float32)
    b_fused = jnp.zeros((num_layers, 1, cp), jnp.float32)
    for l, (w, b) in enumerate(params):
        cout, cin, k = w.shape
        assert k == 3 and cout == hid
        w_t = jnp.transpose(w, (2, 1, 0))                     # (3, Cin, Cout)
        w_fused = w_fused.at[l, :, :cin, :cout].set(w_t)
        b_fused = b_fused.at[l, 0, :cout].set(b)
    w_fused = w_fused.reshape(num_layers * 3, cp, cp).astype(jnp.bfloat16)
    return w_fused, b_fused


def cnn_encoder_forward(inp, params, *, enc_len, res_connection=False):
    """CNNEncoder.forward.

    inp: (bsz, vid_len, input_size) [or (bsz, vid_len, H, W), flattened below]
    params: list of (w, b) per conv layer in nn.Conv1d layout
            w: (hid, Cin, 3), b: (hid,)
    returns (bsz, enc_len, hid)
    """
    # TODO(synk): res_connection=True path (fc_input projection + residual
    # adds) not implemented; module default is res_connection=False.
    assert not res_connection
    bsz, vid_len = inp.shape[0], inp.shape[1]
    assert vid_len >= enc_len

    x = inp.reshape(bsz, vid_len, -1)                         # view(bsz, vid_len, -1)
    cin0 = x.shape[-1]
    hid = params[-1][0].shape[0]
    num_layers = len(params)
    T = enc_len
    Tpad = _round_up(T, 8)
    # Lane-dense padded channel width shared by all layers.
    # TODO(synk): for input_size >> hid_size, give layer 0 its own K width
    # (K-tiled layer-0 weights) instead of padding every layer's Cp to cin0.
    Cp = _round_up(max(cin0, hid), 128)

    # Take the first enc_len frames via the BlockSpec when the tiling rule
    # allows it; otherwise slice once in the wrapper.
    if enc_len == vid_len or enc_len % 8 == 0:
        x_in = x
    else:
        x_in = x[:, :enc_len, :]

    w_fused, b_fused = _pack_params(params, cin0, hid, Cp)

    Bt, need_bytes = _pick_batch_tile(bsz, T, Tpad, Cp, cin0, num_layers)
    grid_b = pl.cdiv(bsz, Bt)
    padded_bsz = grid_b * Bt
    if padded_bsz != bsz:
        x_in = jnp.pad(x_in, ((0, padded_bsz - bsz), (0, 0), (0, 0)))

    vmem_limit = min(max(int(1.5 * need_bytes) + (2 << 20), 32 << 20), 64 << 20)

    kernel = functools.partial(_fused_cnn_kernel, T=T, Tpad=Tpad, Cp=Cp,
                               cin0=cin0, num_layers=num_layers)

    out = pl.pallas_call(
        kernel,
        out_shape=jax.ShapeDtypeStruct((padded_bsz, T, Cp), x.dtype),
        grid_spec=pltpu.PrefetchScalarGridSpec(
            num_scalar_prefetch=0,
            grid=(grid_b,),
            in_specs=[
                pl.BlockSpec((Bt, T, cin0), lambda i: (i, 0, 0)),
                # TODO(synk): single-buffer the constant-index weight/bias
                # blocks (pipeline_mode=pl.Buffered(1)) to save VMEM when Cp
                # is large.
                pl.BlockSpec((num_layers * 3, Cp, Cp), lambda i: (0, 0, 0)),
                pl.BlockSpec((num_layers, 1, Cp), lambda i: (0, 0, 0)),
            ],
            out_specs=pl.BlockSpec((Bt, T, Cp), lambda i: (i, 0, 0)),
            scratch_shapes=[
                pltpu.VMEM((Bt, Tpad + 16, Cp), jnp.bfloat16),
                pltpu.VMEM((Bt, Tpad + 16, Cp), jnp.bfloat16),
            ]),
        compiler_params=pltpu.CompilerParams(
            dimension_semantics=("parallel",),
            vmem_limit_bytes=vmem_limit),
    )(x_in, w_fused, b_fused)

    # Pure layout plumbing: drop the padded batch tail and padded channels.
    return out[:bsz, :, :hid]


def init_params(key, input_size, hid_size, num_layers):
    """Deterministic synthetic Conv1d params (shapes match nn.Conv1d)."""
    params = []
    for layer in range(num_layers):
        cin = input_size if layer == 0 else hid_size
        key, kw, kb = jax.random.split(key, 3)
        w = jax.random.normal(kw, (hid_size, cin, 3), jnp.float32) * 0.05
        b = jax.random.normal(kb, (hid_size,), jnp.float32) * 0.05
        params.append((w, b))
    return params


def ref_forward(inp, params, enc_len):
    """Pure-JAX reference (lax conv), mirroring the kernel's bf16 matmul
    inputs with f32 accumulation."""
    bsz, vid_len = inp.shape[0], inp.shape[1]
    x = inp.reshape(bsz, vid_len, -1)[:, :enc_len, :]
    x = jnp.transpose(x, (0, 2, 1))                           # (B, C, T)
    n = len(params)
    for i, (w, b) in enumerate(params):
        y = jax.lax.conv_general_dilated(
            x.astype(jnp.bfloat16), w.astype(jnp.bfloat16),
            window_strides=(1,), padding=((1, 1),),
            dimension_numbers=("NCH", "OIH", "NCH"),
            preferred_element_type=jnp.float32,
        ) + b[None, :, None]
        x = jnp.maximum(y, 0.0) if i != n - 1 else y
    return jnp.transpose(x, (0, 2, 1))                        # (B, T, hid)


if __name__ == "__main__":
    # Small shapes consistent with the module: bsz x vid_len x input_size
    bsz, vid_len, input_size = 2, 12, 32
    hid_size, num_layers, enc_len = 32, 3, 8

    key = jax.random.PRNGKey(0)
    key, kx = jax.random.split(key)
    inp = jax.random.normal(kx, (bsz, vid_len, input_size), jnp.float32)

    params = init_params(key, input_size, hid_size, num_layers)

    out = cnn_encoder_forward(inp, params, enc_len=enc_len, res_connection=False)
    out = jax.block_until_ready(out)

    assert out.shape == (bsz, enc_len, hid_size), out.shape
    assert out.dtype == jnp.float32

    ref = ref_forward(inp, params, enc_len)
    max_err = float(jnp.max(jnp.abs(out - ref)))
    assert jnp.allclose(out, ref, atol=2e-2, rtol=2e-2), max_err

    print("KERNEL_OK")
</pallas_src>

<mosaic_0001>
module attributes {stable_mosaic.version = 11 : i64} {
  func.func @_fused_cnn_kernel(%arg0: i32, %arg1: memref<1x8x32xf32, #tpu.memory_space<vmem>>, %arg2: memref<9x128x128xbf16, #tpu.memory_space<vmem>>, %arg3: memref<3x1x128xf32, #tpu.memory_space<vmem>>, %arg4: memref<1x8x128xf32, #tpu.memory_space<vmem>>, %arg5: memref<1x24x128xbf16, #tpu.memory_space<vmem>>, %arg6: memref<1x24x128xbf16, #tpu.memory_space<vmem>>) attributes {dimension_semantics = [#tpu.dimension_semantics<parallel>], iteration_bounds = array<i64: 2>, scalar_prefetch = 0 : i64, scratch_operands = 2 : i64, tpu.core_type = #tpu.core_type<tc>, window_params = [{transform_indices = @transform_0, window_bounds = array<i64: 1, 8, 32>}, {pipeline_mode = #tpu.pipeline_mode<synchronous>, transform_indices = @transform_1, window_bounds = array<i64: 9, 128, 128>}, {pipeline_mode = #tpu.pipeline_mode<synchronous>, transform_indices = @transform_2, window_bounds = array<i64: 3, 1, 128>}, {transform_indices = @transform_3, window_bounds = array<i64: 1, 8, 128>}]} {
    %cst = arith.constant 0.000000e+00 : bf16
    %0 = vector.broadcast %cst : bf16 to vector<1x10x128xbf16>
    %c0 = arith.constant 0 : index
    %c7 = arith.constant 7 : index
    %c0_0 = arith.constant 0 : index
    %1 = vector.load %arg5[%c0, %c7, %c0_0] : memref<1x24x128xbf16, #tpu.memory_space<vmem>>, vector<1x10x128xbf16>
    tpu.vector_store %arg5[%c0, %c7, %c0_0], %0 {strides = array<i32>} : memref<1x24x128xbf16, #tpu.memory_space<vmem>>, vector<1x10x128xbf16>,
    %cst_1 = arith.constant 0.000000e+00 : bf16
    %2 = vector.broadcast %cst_1 : bf16 to vector<1x1x128xbf16>
    %c0_2 = arith.constant 0 : index
    %c7_3 = arith.constant 7 : index
    %c0_4 = arith.constant 0 : index
    %3 = vector.load %arg6[%c0_2, %c7_3, %c0_4] : memref<1x24x128xbf16, #tpu.memory_space<vmem>>, vector<1x1x128xbf16>
    tpu.vector_store %arg6[%c0_2, %c7_3, %c0_4], %2 {strides = array<i32>} : memref<1x24x128xbf16, #tpu.memory_space<vmem>>, vector<1x1x128xbf16>,
    %c0_5 = arith.constant 0 : index
    %c16 = arith.constant 16 : index
    %c0_6 = arith.constant 0 : index
    %4 = vector.load %arg6[%c0_5, %c16, %c0_6] : memref<1x24x128xbf16, #tpu.memory_space<vmem>>, vector<1x1x128xbf16>
    tpu.vector_store %arg6[%c0_5, %c16, %c0_6], %2 {strides = array<i32>} : memref<1x24x128xbf16, #tpu.memory_space<vmem>>, vector<1x1x128xbf16>,
    %c0_7 = arith.constant 0 : index
    %c0_8 = arith.constant 0 : index
    %c0_9 = arith.constant 0 : index
    %5 = vector.load %arg1[%c0_7, %c0_8, %c0_9] : memref<1x8x32xf32, #tpu.memory_space<vmem>>, vector<1x8x32xf32>
    %6 = arith.truncf %5 : vector<1x8x32xf32> to vector<1x8x32xbf16>
    %c0_10 = arith.constant 0 : index
    %c8 = arith.constant 8 : index
    %c0_11 = arith.constant 0 : index
    %7 = vector.load %arg5[%c0_10, %c8, %c0_11] : memref<1x24x128xbf16, #tpu.memory_space<vmem>>, vector<1x8x32xbf16>
    tpu.vector_store %arg5[%c0_10, %c8, %c0_11], %6 {strides = array<i32>} : memref<1x24x128xbf16, #tpu.memory_space<vmem>>, vector<1x8x32xbf16>,
    %c0_12 = arith.constant 0 : index
    %c7_13 = arith.constant 7 : index
    %c0_14 = arith.constant 0 : index
    %8 = vector.load %arg5[%c0_12, %c7_13, %c0_14] : memref<1x24x128xbf16, #tpu.memory_space<vmem>>, vector<1x8x128xbf16>
    %9 = vector.shape_cast %8 : vector<1x8x128xbf16> to vector<8x128xbf16>
    %c0_15 = arith.constant 0 : index
    %c8_16 = arith.constant 8 : index
    %c0_17 = arith.constant 0 : index
    %10 = vector.load %arg5[%c0_15, %c8_16, %c0_17] : memref<1x24x128xbf16, #tpu.memory_space<vmem>>, vector<1x8x128xbf16>
    %11 = vector.shape_cast %10 : vector<1x8x128xbf16> to vector<8x128xbf16>
    %c0_18 = arith.constant 0 : index
    %c9 = arith.constant 9 : index
    %c0_19 = arith.constant 0 : index
    %12 = vector.load %arg5[%c0_18, %c9, %c0_19] : memref<1x24x128xbf16, #tpu.memory_space<vmem>>, vector<1x8x128xbf16>
    %13 = vector.shape_cast %12 : vector<1x8x128xbf16> to vector<8x128xbf16>
    %c0_20 = arith.constant 0 : index
    %c0_21 = arith.constant 0 : index
    %c0_22 = arith.constant 0 : index
    %14 = vector.load %arg2[%c0_20, %c0_21, %c0_22] : memref<9x128x128xbf16, #tpu.memory_space<vmem>>, vector<1x128x128xbf16>
    %15 = vector.shape_cast %14 : vector<1x128x128xbf16> to vector<128x128xbf16>
    %cst_23 = arith.constant dense<0.000000e+00> : vector<8x128xf32>
    %16 = tpu.matmul %9, %15, %cst_23 {dimension_numbers = #tpu.dot_dimension_numbers<[1], [0], [0], [1], [0, 0, 1, 1], [], []>} : vector<8x128xbf16>, vector<128x128xbf16>, vector<8x128xf32> -> vector<8x128xf32>
    %c1 = arith.constant 1 : index
    %c0_24 = arith.constant 0 : index
    %c0_25 = arith.constant 0 : index
    %17 = vector.load %arg2[%c1, %c0_24, %c0_25] : memref<9x128x128xbf16, #tpu.memory_space<vmem>>, vector<1x128x128xbf16>
    %18 = vector.shape_cast %17 : vector<1x128x128xbf16> to vector<128x128xbf16>
    %cst_26 = arith.constant dense<0.000000e+00> : vector<8x128xf32>
    %19 = tpu.matmul %11, %18, %cst_26 {dimension_numbers = #tpu.dot_dimension_numbers<[1], [0], [0], [1], [0, 0, 1, 1], [], []>} : vector<8x128xbf16>, vector<128x128xbf16>, vector<8x128xf32> -> vector<8x128xf32>
    %20 = arith.addf %16, %19 : vector<8x128xf32>
    %c2 = arith.constant 2 : index
    %c0_27 = arith.constant 0 : index
    %c0_28 = arith.constant 0 : index
    %21 = vector.load %arg2[%c2, %c0_27, %c0_28] : memref<9x128x128xbf16, #tpu.memory_space<vmem>>, vector<1x128x128xbf16>
    %22 = vector.shape_cast %21 : vector<1x128x128xbf16> to vector<128x128xbf16>
    %cst_29 = arith.constant dense<0.000000e+00> : vector<8x128xf32>
    %23 = tpu.matmul %13, %22, %cst_29 {dimension_numbers = #tpu.dot_dimension_numbers<[1], [0], [0], [1], [0, 0, 1, 1], [], []>} : vector<8x128xbf16>, vector<128x128xbf16>, vector<8x128xf32> -> vector<8x128xf32>
    %24 = arith.addf %20, %23 : vector<8x128xf32>
    %c0_30 = arith.constant 0 : index
    %c0_31 = arith.constant 0 : index
    %c0_32 = arith.constant 0 : index
    %25 = vector.load %arg3[%c0_30, %c0_31, %c0_32] : memref<3x1x128xf32, #tpu.memory_space<vmem>>, vector<1x1x128xf32>
    %26 = vector.shape_cast %25 : vector<1x1x128xf32> to vector<1x128xf32>
    %27 = vector.broadcast %26 : vector<1x128xf32> to vector<8x128xf32>
    %28 = arith.addf %24, %27 : vector<8x128xf32>
    %cst_33 = arith.constant 0.000000e+00 : f32
    %29 = vector.broadcast %cst_33 : f32 to vector<8x128xf32>
    %30 = arith.maximumf %28, %29 : vector<8x128xf32>
    %31 = vector.shape_cast %30 : vector<8x128xf32> to vector<1x8x128xf32>
    %32 = arith.truncf %31 : vector<1x8x128xf32> to vector<1x8x128xbf16>
    %c0_34 = arith.constant 0 : index
    %c8_35 = arith.constant 8 : index
    %c0_36 = arith.constant 0 : index
    %33 = vector.load %arg6[%c0_34, %c8_35, %c0_36] : memref<1x24x128xbf16, #tpu.memory_space<vmem>>, vector<1x8x128xbf16>
    tpu.vector_store %arg6[%c0_34, %c8_35, %c0_36], %32 {strides = array<i32>} : memref<1x24x128xbf16, #tpu.memory_space<vmem>>, vector<1x8x128xbf16>,
    %c0_37 = arith.constant 0 : index
    %c7_38 = arith.constant 7 : index
    %c0_39 = arith.constant 0 : index
    %34 = vector.load %arg6[%c0_37, %c7_38, %c0_39] : memref<1x24x128xbf16, #tpu.memory_space<vmem>>, vector<1x8x128xbf16>
    %35 = vector.shape_cast %34 : vector<1x8x128xbf16> to vector<8x128xbf16>
    %c0_40 = arith.constant 0 : index
    %c8_41 = arith.constant 8 : index
    %c0_42 = arith.constant 0 : index
    %36 = vector.load %arg6[%c0_40, %c8_41, %c0_42] : memref<1x24x128xbf16, #tpu.memory_space<vmem>>, vector<1x8x128xbf16>
    %37 = vector.shape_cast %36 : vector<1x8x128xbf16> to vector<8x128xbf16>
    %c0_43 = arith.constant 0 : index
    %c9_44 = arith.constant 9 : index
    %c0_45 = arith.constant 0 : index
    %38 = vector.load %arg6[%c0_43, %c9_44, %c0_45] : memref<1x24x128xbf16, #tpu.memory_space<vmem>>, vector<1x8x128xbf16>
    %39 = vector.shape_cast %38 : vector<1x8x128xbf16> to vector<8x128xbf16>
    %c3 = arith.constant 3 : index
    %c0_46 = arith.constant 0 : index
    %c0_47 = arith.constant 0 : index
    %40 = vector.load %arg2[%c3, %c0_46, %c0_47] : memref<9x128x128xbf16, #tpu.memory_space<vmem>>, vector<1x128x128xbf16>
    %41 = vector.shape_cast %40 : vector<1x128x128xbf16> to vector<128x128xbf16>
    %cst_48 = arith.constant dense<0.000000e+00> : vector<8x128xf32>
    %42 = tpu.matmul %35, %41, %cst_48 {dimension_numbers = #tpu.dot_dimension_numbers<[1], [0], [0], [1], [0, 0, 1, 1], [], []>} : vector<8x128xbf16>, vector<128x128xbf16>, vector<8x128xf32> -> vector<8x128xf32>
    %c4 = arith.constant 4 : index
    %c0_49 = arith.constant 0 : index
    %c0_50 = arith.constant 0 : index
    %43 = vector.load %arg2[%c4, %c0_49, %c0_50] : memref<9x128x128xbf16, #tpu.memory_space<vmem>>, vector<1x128x128xbf16>
    %44 = vector.shape_cast %43 : vector<1x128x128xbf16> to vector<128x128xbf16>
    %cst_51 = arith.constant dense<0.000000e+00> : vector<8x128xf32>
    %45 = tpu.matmul %37, %44, %cst_51 {dimension_numbers = #tpu.dot_dimension_numbers<[1], [0], [0], [1], [0, 0, 1, 1], [], []>} : vector<8x128xbf16>, vector<128x128xbf16>, vector<8x128xf32> -> vector<8x128xf32>
    %46 = arith.addf %42, %45 : vector<8x128xf32>
    %c5 = arith.constant 5 : index
    %c0_52 = arith.constant 0 : index
    %c0_53 = arith.constant 0 : index
    %47 = vector.load %arg2[%c5, %c0_52, %c0_53] : memref<9x128x128xbf16, #tpu.memory_space<vmem>>, vector<1x128x128xbf16>
    %48 = vector.shape_cast %47 : vector<1x128x128xbf16> to vector<128x128xbf16>
    %cst_54 = arith.constant dense<0.000000e+00> : vector<8x128xf32>
    %49 = tpu.matmul %39, %48, %cst_54 {dimension_numbers = #tpu.dot_dimension_numbers<[1], [0], [0], [1], [0, 0, 1, 1], [], []>} : vector<8x128xbf16>, vector<128x128xbf16>, vector<8x128xf32> -> vector<8x128xf32>
    %50 = arith.addf %46, %49 : vector<8x128xf32>
    %c1_55 = arith.constant 1 : index
    %c0_56 = arith.constant 0 : index
    %c0_57 = arith.constant 0 : index
    %51 = vector.load %arg3[%c1_55, %c0_56, %c0_57] : memref<3x1x128xf32, #tpu.memory_space<vmem>>, vector<1x1x128xf32>
    %52 = vector.shape_cast %51 : vector<1x1x128xf32> to vector<1x128xf32>
    %53 = vector.broadcast %52 : vector<1x128xf32> to vector<8x128xf32>
    %54 = arith.addf %50, %53 : vector<8x128xf32>
    %cst_58 = arith.constant 0.000000e+00 : f32
    %55 = vector.broadcast %cst_58 : f32 to vector<8x128xf32>
    %56 = arith.maximumf %54, %55 : vector<8x128xf32>
    %57 = vector.shape_cast %56 : vector<8x128xf32> to vector<1x8x128xf32>
    %58 = arith.truncf %57 : vector<1x8x128xf32> to vector<1x8x128xbf16>
    %c0_59 = arith.constant 0 : index
    %c8_60 = arith.constant 8 : index
    %c0_61 = arith.constant 0 : index
    %59 = vector.load %arg5[%c0_59, %c8_60, %c0_61] : memref<1x24x128xbf16, #tpu.memory_space<vmem>>, vector<1x8x128xbf16>
    tpu.vector_store %arg5[%c0_59, %c8_60, %c0_61], %58 {strides = array<i32>} : memref<1x24x128xbf16, #tpu.memory_space<vmem>>, vector<1x8x128xbf16>,
    %c0_62 = arith.constant 0 : index
    %c7_63 = arith.constant 7 : index
    %c0_64 = arith.constant 0 : index
    %60 = vector.load %arg5[%c0_62, %c7_63, %c0_64] : memref<1x24x128xbf16, #tpu.memory_space<vmem>>, vector<1x8x128xbf16>
    %61 = vector.shape_cast %60 : vector<1x8x128xbf16> to vector<8x128xbf16>
    %c0_65 = arith.constant 0 : index
    %c8_66 = arith.constant 8 : index
    %c0_67 = arith.constant 0 : index
    %62 = vector.load %arg5[%c0_65, %c8_66, %c0_67] : memref<1x24x128xbf16, #tpu.memory_space<vmem>>, vector<1x8x128xbf16>
    %63 = vector.shape_cast %62 : vector<1x8x128xbf16> to vector<8x128xbf16>
    %c0_68 = arith.constant 0 : index
    %c9_69 = arith.constant 9 : index
    %c0_70 = arith.constant 0 : index
    %64 = vector.load %arg5[%c0_68, %c9_69, %c0_70] : memref<1x24x128xbf16, #tpu.memory_space<vmem>>, vector<1x8x128xbf16>
    %65 = vector.shape_cast %64 : vector<1x8x128xbf16> to vector<8x128xbf16>
    %c6 = arith.constant 6 : index
    %c0_71 = arith.constant 0 : index
    %c0_72 = arith.constant 0 : index
    %66 = vector.load %arg2[%c6, %c0_71, %c0_72] : memref<9x128x128xbf16, #tpu.memory_space<vmem>>, vector<1x128x128xbf16>
    %67 = vector.shape_cast %66 : vector<1x128x128xbf16> to vector<128x128xbf16>
    %cst_73 = arith.constant dense<0.000000e+00> : vector<8x128xf32>
    %68 = tpu.matmul %61, %67, %cst_73 {dimension_numbers = #tpu.dot_dimension_numbers<[1], [0], [0], [1], [0, 0, 1, 1], [], []>} : vector<8x128xbf16>, vector<128x128xbf16>, vector<8x128xf32> -> vector<8x128xf32>
    %c7_74 = arith.constant 7 : index
    %c0_75 = arith.constant 0 : index
    %c0_76 = arith.constant 0 : index
    %69 = vector.load %arg2[%c7_74, %c0_75, %c0_76] : memref<9x128x128xbf16, #tpu.memory_space<vmem>>, vector<1x128x128xbf16>
    %70 = vector.shape_cast %69 : vector<1x128x128xbf16> to vector<128x128xbf16>
    %cst_77 = arith.constant dense<0.000000e+00> : vector<8x128xf32>
    %71 = tpu.matmul %63, %70, %cst_77 {dimension_numbers = #tpu.dot_dimension_numbers<[1], [0], [0], [1], [0, 0, 1, 1], [], []>} : vector<8x128xbf16>, vector<128x128xbf16>, vector<8x128xf32> -> vector<8x128xf32>
    %72 = arith.addf %68, %71 : vector<8x128xf32>
    %c8_78 = arith.constant 8 : index
    %c0_79 = arith.constant 0 : index
    %c0_80 = arith.constant 0 : index
    %73 = vector.load %arg2[%c8_78, %c0_79, %c0_80] : memref<9x128x128xbf16, #tpu.memory_space<vmem>>, vector<1x128x128xbf16>
    %74 = vector.shape_cast %73 : vector<1x128x128xbf16> to vector<128x128xbf16>
    %cst_81 = arith.constant dense<0.000000e+00> : vector<8x128xf32>
    %75 = tpu.matmul %65, %74, %cst_81 {dimension_numbers = #tpu.dot_dimension_numbers<[1], [0], [0], [1], [0, 0, 1, 1], [], []>} : vector<8x128xbf16>, vector<128x128xbf16>, vector<8x128xf32> -> vector<8x128xf32>
    %76 = arith.addf %72, %75 : vector<8x128xf32>
    %c2_82 = arith.constant 2 : index
    %c0_83 = arith.constant 0 : index
    %c0_84 = arith.constant 0 : index
    %77 = vector.load %arg3[%c2_82, %c0_83, %c0_84] : memref<3x1x128xf32, #tpu.memory_space<vmem>>, vector<1x1x128xf32>
    %78 = vector.shape_cast %77 : vector<1x1x128xf32> to vector<1x128xf32>
    %79 = vector.broadcast %78 : vector<1x128xf32> to vector<8x128xf32>
    %80 = arith.addf %76, %79 : vector<8x128xf32>
    %81 = vector.shape_cast %80 : vector<8x128xf32> to vector<1x8x128xf32>
    %c0_85 = arith.constant 0 : index
    %c0_86 = arith.constant 0 : index
    %c0_87 = arith.constant 0 : index
    %82 = vector.load %arg4[%c0_85, %c0_86, %c0_87] : memref<1x8x128xf32, #tpu.memory_space<vmem>>, vector<1x8x128xf32>
    tpu.vector_store %arg4[%c0_85, %c0_86, %c0_87], %81 {strides = array<i32>} : memref<1x8x128xf32, #tpu.memory_space<vmem>>, vector<1x8x128xf32>,
    return
  }
  func.func @transform_0(%arg0: i32) -> (i32, i32, i32) {
    %c0_i32 = arith.constant 0 : i32
    %c0_i32_0 = arith.constant 0 : i32
    %c0_i32_1 = arith.constant 0 : i32
    return %arg0, %c0_i32, %c0_i32_0 : i32, i32, i32
  }
  func.func @transform_1(%arg0: i32) -> (i32, i32, i32) {
    %c0_i32 = arith.constant 0 : i32
    %c0_i32_0 = arith.constant 0 : i32
    %c0_i32_1 = arith.constant 0 : i32
    %c0_i32_2 = arith.constant 0 : i32
    return %c0_i32, %c0_i32_0, %c0_i32_1 : i32, i32, i32
  }
  func.func @transform_2(%arg0: i32) -> (i32, i32, i32) {
    %c0_i32 = arith.constant 0 : i32
    %c0_i32_0 = arith.constant 0 : i32
    %c0_i32_1 = arith.constant 0 : i32
    %c0_i32_2 = arith.constant 0 : i32
    return %c0_i32, %c0_i32_0, %c0_i32_1 : i32, i32, i32
  }
  func.func @transform_3(%arg0: i32) -> (i32, i32, i32) {
    %c0_i32 = arith.constant 0 : i32
    %c0_i32_0 = arith.constant 0 : i32
    %c0_i32_1 = arith.constant 0 : i32
    return %arg0, %c0_i32, %c0_i32_0 : i32, i32, i32
  }
}

</mosaic_0001>

<llo_original>
// kernel: tpu_custom_call.1
$region0: #{tpu_custom_call.1}
  #allocation0 [shape = 'u32[]', space=smem, size = 0x4, offset = 0x4, fixed_abs, tag = 'smem constant byte address 0x4 - core index']
  #allocation1 [shape = 'u32[72,128]{1,0:T(1,128)}', space=vmem, size = 0x9000, scoped, tag = 'internal scratch']
  #allocation2 [shape = 'bf16[1,24,128]{2,1,0:T(8,128)(2,1)}', space=vmem, size = 0x1800, scoped, tag = 'scratch operand']
  #allocation3 [shape = 'bf16[1,24,128]{2,1,0:T(8,128)(2,1)}', space=vmem, size = 0x1800, scoped, tag = 'scratch operand']
  %s0 = inlined_call_operand.vmem [shape: f32[2,12,32], index: 0, kind: input, shape index: {}]
  %s1 = inlined_call_operand.hbm [shape: bf16[9,128,128], index: 1, kind: input, shape index: {}]
  %s2 = inlined_call_operand.vmem [shape: f32[3,1,128], index: 2, kind: input, shape index: {}]
  %s3 = inlined_call_operand.hbm [shape: f32[2,8,128], index: 3, kind: output, shape index: {}]
  %s4 = sld [smem:[#allocation0]]
  $region49: #{tpu_custom_call.1} parent=0
    _
  %s6 = ssub.s32 1, %s4
  %s7 = scalar_select 0, %s6, %s4
  $region1: #{tpu_custom_call.1} parent=0
    #allocation4 [shape = 'u8[294912]{0}', space=vmem, size = 0x48000, scoped, tag = 'input window, operand 1, single buffered']
    #allocation5 [shape = 's32[2]{0}', space=sflag, size = 0x8, scoped, tag = 'scoped memory for tpu_custom_call.1']
    #allocation6 [shape = 's32[2]{0}', space=sflag, size = 0x8, scoped, tag = 'scoped memory for tpu_custom_call.1']
    #allocation7 [shape = 'u8[8192]{0}', space=vmem, size = 0x2000, scoped, tag = 'output window, operand 0']
    %8 = vsyncpa [#allocation5], 0
    %9 = vsyncpa [#allocation6], 0
    %s10 = scalar_lea.sflag [#allocation6], 1
    %11 = vsyncpa %s10, 0
    loop: start=0, step=1, limit=4
    $region2: #{tpu_custom_call.1} parent=1 // loop_pre_header
      _
    $region3: #{tpu_custom_call.1} parent=1 // loop_header
      %s13 = sphi 0, %s17
      %p14 = scmp.ge.s32.totalorder %s13, 4
      %s23 = sphi 0, %s25
      %s26 = sphi 0, %s23
      %s27 = sphi 0, %s26
      %s43 = sphi 0, %s27
      %s47 = sphi 0, %s47
      %s49 = sphi 0, %s47
      %s50 = sphi 0, %s49
      %s64 = sphi 0, %s50
      %s68 = sphi 0, %s68
      %s70 = sphi 0, %s68
      %s71 = sphi 0, %s70
      %s85 = sphi 0, %s71
      %s91 = sphi 0, %s93
      %s94 = sphi 0, %s91
      %s95 = sphi 0, %s94
      %s111 = sphi 0, %s95
    $region4: #{tpu_custom_call.1} parent=1 // loop_header_branch
      %16 = sbr.rel (%p14) target = $region8
    $region5: #{tpu_custom_call.1} parent=1 // loop_body
      %s18 = ssub.s32 %s13, 1
      %s19 = ssub.s32 %s13, 2
      %s20 = sadd.s32 %s13, 1
      %s21 = ssub.s32 %s13, %s20
      %p22 = scmp.eq.s32.totalorder %s21, 0
      %s24 = sadd.s32 %s23, 1
      %s25 = scalar_select %p22, %s23, %s24
      %p28 = pneg %p22
      %p29 = scmp.eq.s32.totalorder %s13, 1
      %p30 = por %p28, %p29
      %p31 = scmp.ne.s32.totalorder %s23, %s26
      %p32 = scmp.eq.s32.totalorder %s13, 0
      %p33 = por %p31, %p32
      %p34 = scmp.ne.s32.totalorder %s23, %s26
      %p35 = scmp.eq.s32.totalorder %s18, 1
      %p36 = por %p34, %p35
      %p37 = scmp.ne.s32.totalorder %s26, %s27
      %p38 = scmp.eq.s32.totalorder %s18, 0
      %p39 = por %p37, %p38
      %p40 = scmp.ne.s32.totalorder %s26, %s27
      %p41 = scmp.eq.s32.totalorder %s19, 1
      %p42 = por %p40, %p41
      %p44 = scmp.ne.s32.totalorder %s27, %s43
      %p45 = scmp.eq.s32.totalorder %s19, 0
      %p46 = por %p44, %p45
      %s48 = sadd.s32 %s47, 1
      %p51 = scmp.eq.s32.totalorder %s13, 1
      %p52 = scmp.ne.s32.totalorder %s47, %s49
      %p53 = scmp.eq.s32.totalorder %s13, 0
      %p54 = por %p52, %p53
      %p55 = scmp.ne.s32.totalorder %s47, %s49
      %p56 = scmp.eq.s32.totalorder %s18, 1
      %p57 = por %p55, %p56
      %p58 = scmp.ne.s32.totalorder %s49, %s50
      %p59 = scmp.eq.s32.totalorder %s18, 0
      %p60 = por %p58, %p59
      %p61 = scmp.ne.s32.totalorder %s49, %s50
      %p62 = scmp.eq.s32.totalorder %s19, 1
      %p63 = por %p61, %p62
      %p65 = scmp.ne.s32.totalorder %s50, %s64
      %p66 = scmp.eq.s32.totalorder %s19, 0
      %p67 = por %p65, %p66
      %s69 = sadd.s32 %s68, 1
      %p72 = scmp.eq.s32.totalorder %s13, 1
      %p73 = scmp.ne.s32.totalorder %s68, %s70
      %p74 = scmp.eq.s32.totalorder %s13, 0
      %p75 = por %p73, %p74
      %p76 = scmp.ne.s32.totalorder %s68, %s70
      %p77 = scmp.eq.s32.totalorder %s18, 1
      %p78 = por %p76, %p77
      %p79 = scmp.ne.s32.totalorder %s70, %s71
      %p80 = scmp.eq.s32.totalorder %s18, 0
      %p81 = por %p79, %p80
      %p82 = scmp.ne.s32.totalorder %s70, %s71
      %p83 = scmp.eq.s32.totalorder %s19, 1
      %p84 = por %p82, %p83
      %p86 = scmp.ne.s32.totalorder %s71, %s85
      %p87 = scmp.eq.s32.totalorder %s19, 0
      %p88 = por %p86, %p87
      %s89 = ssub.s32 %s13, %s20
      %p90 = scmp.eq.s32.totalorder %s89, 0
      %s92 = sadd.s32 %s91, 1
      %s93 = scalar_select %p90, %s91, %s92
      %p96 = pneg %p90
      %p97 = scmp.eq.s32.totalorder %s13, 1
      %p98 = por %p96, %p97
      %p99 = scmp.ne.s32.totalorder %s91, %s94
      %p100 = scmp.eq.s32.totalorder %s13, 0
      %p101 = por %p99, %p100
      %p102 = scmp.ne.s32.totalorder %s91, %s94
      %p103 = scmp.eq.s32.totalorder %s18, 1
      %p104 = por %p102, %p103
      %p105 = scmp.ne.s32.totalorder %s94, %s95
      %p106 = scmp.eq.s32.totalorder %s18, 0
      %p107 = por %p105, %p106
      %p108 = scmp.ne.s32.totalorder %s94, %s95
      %p109 = scmp.eq.s32.totalorder %s19, 1
      %p110 = por %p108, %p109
      %p112 = scmp.ne.s32.totalorder %s95, %s111
      %p113 = scmp.eq.s32.totalorder %s19, 0
      %p114 = por %p112, %p113
      %p115 = scmp.le.s32.totalorder 1, %s13
      %p116 = scmp.lt.s32.totalorder %s13, 3
      %p117 = pnand %p115, %p116
      %p118 = pneg %p117
      // Predicated region
      $region9: #{tpu_custom_call.1} parent=5 // pred_check
        _
      $region10: #{tpu_custom_call.1} parent=5 // pred_check_branch
        %120 = sbr.rel (%p117) target = $region12
      $region11: #{tpu_custom_call.1} parent=5 // pred_region
        %s121 = ssub.s32 %s13, 1
        // Predicated region
        $region13: #{tpu_custom_call.1} parent=11 // pred_check
          %p122 = pneg %p60
        $region14: #{tpu_custom_call.1} parent=11 // pred_check_branch
          %124 = sbr.rel (%p122) target = $region16
        $region15: #{tpu_custom_call.1} parent=11 // pred_region
          %126 = vsyncadd [#allocation5], 0
          %s127 = sshll.u32 %s1, 4
          %s128 = int_to_ptr.hbm [resolvable:$true] %s127
          %s129 = sshll.u32 [#allocation4], 4
          %s130 = int_to_ptr.vmem [resolvable:$true] %s129
          %135 = dma.hbm_to_vmem [thread:$0]  %s128, 9216, %s130, [#allocation5], 64, 64, 4
        $region16: #{tpu_custom_call.1} parent=11 // pred_fallthru
          _
        // Predicated region
        $region17: #{tpu_custom_call.1} parent=11 // pred_check
          %p136 = pneg %p81
        $region18: #{tpu_custom_call.1} parent=11 // pred_check_branch
          %138 = sbr.rel (%p136) target = $region20
        $region19: #{tpu_custom_call.1} parent=11 // pred_region
          _
        $region20: #{tpu_custom_call.1} parent=11 // pred_fallthru
          _
      $region12: #{tpu_custom_call.1} parent=5 // pred_fallthru
        _
      %p139 = scmp.lt.s32.totalorder %s13, 2
      // Predicated region
      $region21: #{tpu_custom_call.1} parent=5 // pred_check
        %p140 = pneg %p139
      $region22: #{tpu_custom_call.1} parent=5 // pred_check_branch
        %142 = sbr.rel (%p140) target = $region24
      $region23: #{tpu_custom_call.1} parent=5 // pred_region
        // Predicated region
        $region25: #{tpu_custom_call.1} parent=23 // pred_check
          %p143 = pneg %p33
        $region26: #{tpu_custom_call.1} parent=23 // pred_check_branch
          %145 = sbr.rel (%p143) target = $region28
        $region27: #{tpu_custom_call.1} parent=23 // pred_region
          %p146 = scmp.lt.s32.totalorder %s13, 1
          %s147 = scalar_select %p146, %s13, 1
          %s148 = smul.addr %s147, 2
          %s149 = smul.addr %s148, 8
          %s150 = scalar_lea.vmem %s0, %s149
        $region28: #{tpu_custom_call.1} parent=23 // pred_fallthru
          _
      $region24: #{tpu_custom_call.1} parent=5 // pred_fallthru
        _
      %p151 = scmp.le.s32.totalorder 1, %s13
      %p152 = scmp.lt.s32.totalorder %s13, 3
      %p153 = pnand %p151, %p152
      %p154 = pneg %p153
      // Predicated region
      $region29: #{tpu_custom_call.1} parent=5 // pred_check
        _
      $region30: #{tpu_custom_call.1} parent=5 // pred_check_branch
        %156 = sbr.rel (%p153) target = $region32
      $region31: #{tpu_custom_call.1} parent=5 // pred_region
        %s157 = ssub.s32 %s13, 1
        // Predicated region
        $region33: #{tpu_custom_call.1} parent=31 // pred_check
          %p158 = pneg %p60
        $region34: #{tpu_custom_call.1} parent=31 // pred_check_branch
          %160 = sbr.rel (%p158) target = $region36
        $region35: #{tpu_custom_call.1} parent=31 // pred_region
          %162 = dma.done [#allocation5], 9216
        $region36: #{tpu_custom_call.1} parent=31 // pred_fallthru
          _
        %p163 = scmp.lt.s32.totalorder %s18, 1
        %s164 = scalar_select %p163, %s18, 1
        %s165 = smul.addr %s164, 2
        %s166 = smul.addr %s165, 8
        %s167 = scalar_lea.vmem %s0, %s166
        %p168 = pneg %p39
        %p169 = pneg %p36
        %p170 = pneg %p60
        %p171 = pneg %p57
        %p172 = pneg %p81
        %p173 = pneg %p78
        %p174 = pneg %p107
        %p175 = pneg %p104
        %s176 = sand.u32 %s94, 1
        %s177 = scalar_lea.sflag [#allocation6], %s176
        %s178 = sand.u32 %s94, 1
        %s179 = smul.addr %s178, 8
        %s180 = scalar_lea.vmem [#allocation7], %s179
        %p181 = scmp.lt.s32.totalorder %s18, 1
        %s182 = scalar_select %p181, %s18, 1
        %s183 = smul.addr %s182, 2
        %s184 = smul.addr %s183, 8
        %s185 = scalar_lea.vmem %s0, %s184
        %vm187 = vcmask 1043459
        %vm188 = vsmask.f32 7950
        %vm189 = vmand %vm187, %vm188
        %v190 = vld [vmem:[#allocation2] sm:$0x8]
        %v191 = vsel %vm189, 0, %v190
        %192 = vst [vmem:[#allocation2] sm:$0x8] %v191
        %193 = vst [vmem:[#allocation2 + $0x4] sm:$0xf] 0
        %vm194 = vcmask 1040384
        %vm195 = vsmask.f32 256
        %vm196 = vmand %vm194, %vm195
        %v197 = vld [vmem:[#allocation2 + $0x8] sm:$0x1]
        %v198 = vsel %vm196, 0, %v197
        %199 = vst [vmem:[#allocation2 + $0x8] sm:$0x1] %v198
        %v200 = vld [vmem:[#allocation3] sm:$0x8]
        %v201 = vsel %vm189, 0, %v200
        %202 = vst [vmem:[#allocation3] sm:$0x8] %v201
        %v203 = vld [vmem:[#allocation3 + $0x8] sm:$0x1]
        %v204 = vsel %vm196, 0, %v203
        %205 = vst [vmem:[#allocation3 + $0x8] sm:$0x1] %v204
        %v206 = vld [vmem:[%s185] sm:$0xff]
        %v207 = vpack.c.bf16 %v206, %v206
        %vm208 = vcmask 257024
        %209 = vst.msk [vmem:[#allocation2 + $0x4] sm:$0xf] %vm208, %v207
        %v210 = vld [vmem:[#allocation2] sm:$0x8]
        %v211 = vld [vmem:[#allocation2 + $0x4] sm:$0xf]
        %v212 = vld [vmem:[#allocation2 + $0x4] sm:$0xf]
        %v213 = vld [vmem:[#allocation2 + $0x8] sm:$0x1]
        %v214 = vld [vmem:[#allocation4] sm:$0xf]
        %v215 = vld [vmem:[#allocation4 + $0x4] sm:$0xf]
        %v216 = vld [vmem:[#allocation4 + $0x8] sm:$0xf]
        %v217 = vld [vmem:[#allocation4 + $0xc] sm:$0xf]
        %v218 = vld [vmem:[#allocation4 + $0x10] sm:$0xf]
        %v219 = vld [vmem:[#allocation4 + $0x14] sm:$0xf]
        %v220 = vld [vmem:[#allocation4 + $0x18] sm:$0xf]
        %v221 = vld [vmem:[#allocation4 + $0x1c] sm:$0xf]
        %v222 = vld [vmem:[#allocation4 + $0x20] sm:$0xf]
        %v223 = vld [vmem:[#allocation4 + $0x24] sm:$0xf]
        %v224 = vld [vmem:[#allocation4 + $0x28] sm:$0xf]
        %v225 = vld [vmem:[#allocation4 + $0x2c] sm:$0xf]
        %v226 = vld [vmem:[#allocation4 + $0x30] sm:$0xf]
        %v227 = vld [vmem:[#allocation4 + $0x34] sm:$0xf]
        %v228 = vld [vmem:[#allocation4 + $0x38] sm:$0xf]
        %v229 = vld [vmem:[#allocation4 + $0x3c] sm:$0xf]
        %s230 = scalar_lea.vmem [#allocation4], 64
        %v231 = vld [vmem:[%s230] sm:$0xf]
        %v232 = vld [vmem:[%s230 + $0x4] sm:$0xf]
        %v233 = vld [vmem:[%s230 + $0x8] sm:$0xf]
        %v234 = vld [vmem:[%s230 + $0xc] sm:$0xf]
        %v235 = vld [vmem:[%s230 + $0x10] sm:$0xf]
        %v236 = vld [vmem:[%s230 + $0x14] sm:$0xf]
        %v237 = vld [vmem:[%s230 + $0x18] sm:$0xf]
        %v238 = vld [vmem:[%s230 + $0x1c] sm:$0xf]
        %v239 = vld [vmem:[%s230 + $0x20] sm:$0xf]
        %v240 = vld [vmem:[%s230 + $0x24] sm:$0xf]
        %v241 = vld [vmem:[%s230 + $0x28] sm:$0xf]
        %v242 = vld [vmem:[%s230 + $0x2c] sm:$0xf]
        %v243 = vld [vmem:[%s230 + $0x30] sm:$0xf]
        %v244 = vld [vmem:[%s230 + $0x34] sm:$0xf]
        %v245 = vld [vmem:[%s230 + $0x38] sm:$0xf]
        %v246 = vld [vmem:[%s230 + $0x3c] sm:$0xf]
        %v263 = vunpack.c.l.b16 %v231
        %v264 = vunpack.c.l.b16 %v232
        %v265 = vunpack.c.l.b16 %v233
        %v266 = vunpack.c.l.b16 %v234
        %v267 = vunpack.c.l.b16 %v235
        %v268 = vunpack.c.l.b16 %v236
        %v269 = vunpack.c.l.b16 %v237
        %v270 = vunpack.c.l.b16 %v238
        %v271 = vunpack.c.l.b16 %v239
        %v272 = vunpack.c.l.b16 %v240
        %v273 = vunpack.c.l.b16 %v241
        %v274 = vunpack.c.l.b16 %v242
        %v275 = vunpack.c.l.b16 %v243
        %v276 = vunpack.c.l.b16 %v244
        %v277 = vunpack.c.l.b16 %v245
        %v278 = vunpack.c.l.b16 %v246
        %v279 = vpack.c.b16 %v264, %v263
        %v280 = vpack.c.b16 %v266, %v265
        %v281 = vpack.c.b16 %v268, %v267
        %v282 = vpack.c.b16 %v270, %v269
        %v283 = vpack.c.b16 %v272, %v271
        %v284 = vpack.c.b16 %v274, %v273
        %v285 = vpack.c.b16 %v276, %v275
        %v286 = vpack.c.b16 %v278, %v277
        %295 = vmatpush.bf16.msra.mxu0 %v286
        %296 = vmatpush.bf16.msra.mxu0 %v285
        %297 = vmatpush.bf16.msra.mxu0 %v284
        %298 = vmatpush.bf16.msra.mxu0 %v283
        %299 = vmatpush.bf16.msra.mxu0 %v282
        %300 = vmatpush.bf16.msra.mxu0 %v281
        %301 = vmatpush.bf16.msra.mxu0 %v280
        %302 = vmatpush.bf16.msra.mxu0 %v279
        %303 = vmatmul.bf16.gmra.mxu0 %v211
        %v304 = vpop.f32.mrf.mxu0
        %v305 = vadd.f32 0.0, %v304
        %v306 = vpop.f32.mrf.mxu0
        %307 = vdwg.mxu0
        %v310 = vunpack.c.l.b16 %v210
        %v311 = vunpack.c.l.b16 %v211
        %v312 = vpack.c.b16 %v311, %v310
        %v314 = vshrl.u32 %v312, 16
        %v316 = vrot.slane %v314, 3
        %v317 = vshll.u32 %v312, 16
        %v319 = vrot.slane %v317, 4
        %v320 = vor.u32 %v316, %v319
        %v338 = vunpack.c.l.b16 %v214
        %v339 = vunpack.c.l.b16 %v215
        %v340 = vunpack.c.l.b16 %v216
        %v341 = vunpack.c.l.b16 %v217
        %v342 = vunpack.c.l.b16 %v218
        %v343 = vunpack.c.l.b16 %v219
        %v344 = vunpack.c.l.b16 %v220
        %v345 = vunpack.c.l.b16 %v221
        %v346 = vunpack.c.l.b16 %v222
        %v347 = vunpack.c.l.b16 %v223
        %v348 = vunpack.c.l.b16 %v224
        %v349 = vunpack.c.l.b16 %v225
        %v350 = vunpack.c.l.b16 %v226
        %v351 = vunpack.c.l.b16 %v227
        %v352 = vunpack.c.l.b16 %v228
        %v353 = vunpack.c.l.b16 %v229
        %v354 = vpack.c.b16 %v339, %v338
        %v355 = vpack.c.b16 %v341, %v340
        %v356 = vpack.c.b16 %v343, %v342
        %v357 = vpack.c.b16 %v345, %v344
        %v358 = vpack.c.b16 %v347, %v346
        %v359 = vpack.c.b16 %v349, %v348
        %v360 = vpack.c.b16 %v351, %v350
        %v361 = vpack.c.b16 %v353, %v352
        %370 = vmatpush.bf16.msra.mxu0 %v361
        %371 = vmatpush.bf16.msra.mxu0 %v360
        %372 = vmatpush.bf16.msra.mxu0 %v359
        %373 = vmatpush.bf16.msra.mxu0 %v358
        %374 = vmatpush.bf16.msra.mxu0 %v357
        %375 = vmatpush.bf16.msra.mxu0 %v356
        %376 = vmatpush.bf16.msra.mxu0 %v355
        %377 = vmatpush.bf16.msra.mxu0 %v354
        %378 = vmatmul.bf16.gmra.mxu0 %v320
        %v379 = vpop.f32.mrf.mxu0
        %v380 = vadd.f32 %v305, %v379
        %v381 = vpop.f32.mrf.mxu0
        %382 = vdwg.mxu0
        %s383 = scalar_lea.vmem [#allocation4], 128
        %v384 = vld [vmem:[%s383] sm:$0xf]
        %v385 = vld [vmem:[%s383 + $0x4] sm:$0xf]
        %v386 = vld [vmem:[%s383 + $0x8] sm:$0xf]
        %v387 = vld [vmem:[%s383 + $0xc] sm:$0xf]
        %v388 = vld [vmem:[%s383 + $0x10] sm:$0xf]
        %v389 = vld [vmem:[%s383 + $0x14] sm:$0xf]
        %v390 = vld [vmem:[%s383 + $0x18] sm:$0xf]
        %v391 = vld [vmem:[%s383 + $0x1c] sm:$0xf]
        %v392 = vld [vmem:[%s383 + $0x20] sm:$0xf]
        %v393 = vld [vmem:[%s383 + $0x24] sm:$0xf]
        %v394 = vld [vmem:[%s383 + $0x28] sm:$0xf]
        %v395 = vld [vmem:[%s383 + $0x2c] sm:$0xf]
        %v396 = vld [vmem:[%s383 + $0x30] sm:$0xf]
        %v397 = vld [vmem:[%s383 + $0x34] sm:$0xf]
        %v398 = vld [vmem:[%s383 + $0x38] sm:$0xf]
        %v399 = vld [vmem:[%s383 + $0x3c] sm:$0xf]
        %v402 = vunpack.c.l.b16 %v212
        %v403 = vunpack.c.l.b16 %v213
        %v404 = vpack.c.b16 %v403, %v402
        %v406 = vshrl.u32 %v404, 16
        %v408 = vshll.u32 %v404, 16
        %v410 = vrot.slane %v408, 1
        %v411 = vor.u32 %v406, %v410
        %v429 = vunpack.c.l.b16 %v384
        %v430 = vunpack.c.l.b16 %v385
        %v431 = vunpack.c.l.b16 %v386
        %v432 = vunpack.c.l.b16 %v387
        %v433 = vunpack.c.l.b16 %v388
        %v434 = vunpack.c.l.b16 %v389
        %v435 = vunpack.c.l.b16 %v390
        %v436 = vunpack.c.l.b16 %v391
        %v437 = vunpack.c.l.b16 %v392
        %v438 = vunpack.c.l.b16 %v393
        %v439 = vunpack.c.l.b16 %v394
        %v440 = vunpack.c.l.b16 %v395
        %v441 = vunpack.c.l.b16 %v396
        %v442 = vunpack.c.l.b16 %v397
        %v443 = vunpack.c.l.b16 %v398
        %v444 = vunpack.c.l.b16 %v399
        %v445 = vpack.c.b16 %v430, %v429
        %v446 = vpack.c.b16 %v432, %v431
        %v447 = vpack.c.b16 %v434, %v433
        %v448 = vpack.c.b16 %v436, %v435
        %v449 = vpack.c.b16 %v438, %v437
        %v450 = vpack.c.b16 %v440, %v439
        %v451 = vpack.c.b16 %v442, %v441
        %v452 = vpack.c.b16 %v444, %v443
        %461 = vmatpush.bf16.msra.mxu0 %v452
        %462 = vmatpush.bf16.msra.mxu0 %v451
        %463 = vmatpush.bf16.msra.mxu0 %v450
        %464 = vmatpush.bf16.msra.mxu0 %v449
        %465 = vmatpush.bf16.msra.mxu0 %v448
        %466 = vmatpush.bf16.msra.mxu0 %v447
        %467 = vmatpush.bf16.msra.mxu0 %v446
        %468 = vmatpush.bf16.msra.mxu0 %v445
        %469 = vmatmul.bf16.gmra.mxu0 %v411
        %v470 = vpop.f32.mrf.mxu0
        %v471 = vadd.f32 0.0, %v470
        %v472 = vpop.f32.mrf.mxu0
        %473 = vdwg.mxu0
        %v474 = vadd.f32 %v380, %v471
        %v475 = vld [vmem:[%s2] sm:$0x1]
        %v477 = vperm.slane %v475, 0
        %v479 = vadd.f32 %v474, %v477
        %v480 = vmax.f32 %v479, 0.0
        %v481 = vpack.c.bf16 %v480, %v480
        %482 = vst [vmem:[#allocation3 + $0x4] sm:$0xf] %v481
        %v483 = vld [vmem:[#allocation3] sm:$0x8]
        %v484 = vld [vmem:[#allocation3 + $0x4] sm:$0xf]
        %v485 = vld [vmem:[#allocation3 + $0x4] sm:$0xf]
        %v486 = vld [vmem:[#allocation3 + $0x8] sm:$0x1]
        %s487 = scalar_lea.vmem [#allocation4], 192
        %v488 = vld [vmem:[%s487] sm:$0xf]
        %v489 = vld [vmem:[%s487 + $0x4] sm:$0xf]
        %v490 = vld [vmem:[%s487 + $0x8] sm:$0xf]
        %v491 = vld [vmem:[%s487 + $0xc] sm:$0xf]
        %v492 = vld [vmem:[%s487 + $0x10] sm:$0xf]
        %v493 = vld [vmem:[%s487 + $0x14] sm:$0xf]
        %v494 = vld [vmem:[%s487 + $0x18] sm:$0xf]
        %v495 = vld [vmem:[%s487 + $0x1c] sm:$0xf]
        %v496 = vld [vmem:[%s487 + $0x20] sm:$0xf]
        %v497 = vld [vmem:[%s487 + $0x24] sm:$0xf]
        %v498 = vld [vmem:[%s487 + $0x28] sm:$0xf]
        %v499 = vld [vmem:[%s487 + $0x2c] sm:$0xf]
        %v500 = vld [vmem:[%s487 + $0x30] sm:$0xf]
        %v501 = vld [vmem:[%s487 + $0x34] sm:$0xf]
        %v502 = vld [vmem:[%s487 + $0x38] sm:$0xf]
        %v503 = vld [vmem:[%s487 + $0x3c] sm:$0xf]
        %s504 = scalar_lea.vmem [#allocation4], 256
        %v505 = vld [vmem:[%s504] sm:$0xf]
        %v506 = vld [vmem:[%s504 + $0x4] sm:$0xf]
        %v507 = vld [vmem:[%s504 + $0x8] sm:$0xf]
        %v508 = vld [vmem:[%s504 + $0xc] sm:$0xf]
        %v509 = vld [vmem:[%s504 + $0x10] sm:$0xf]
        %v510 = vld [vmem:[%s504 + $0x14] sm:$0xf]
        %v511 = vld [vmem:[%s504 + $0x18] sm:$0xf]
        %v512 = vld [vmem:[%s504 + $0x1c] sm:$0xf]
        %v513 = vld [vmem:[%s504 + $0x20] sm:$0xf]
        %v514 = vld [vmem:[%s504 + $0x24] sm:$0xf]
        %v515 = vld [vmem:[%s504 + $0x28] sm:$0xf]
        %v516 = vld [vmem:[%s504 + $0x2c] sm:$0xf]
        %v517 = vld [vmem:[%s504 + $0x30] sm:$0xf]
        %v518 = vld [vmem:[%s504 + $0x34] sm:$0xf]
        %v519 = vld [vmem:[%s504 + $0x38] sm:$0xf]
        %v520 = vld [vmem:[%s504 + $0x3c] sm:$0xf]
        %v537 = vunpack.c.l.b16 %v505
        %v538 = vunpack.c.l.b16 %v506
        %v539 = vunpack.c.l.b16 %v507
        %v540 = vunpack.c.l.b16 %v508
        %v541 = vunpack.c.l.b16 %v509
        %v542 = vunpack.c.l.b16 %v510
        %v543 = vunpack.c.l.b16 %v511
        %v544 = vunpack.c.l.b16 %v512
        %v545 = vunpack.c.l.b16 %v513
        %v546 = vunpack.c.l.b16 %v514
        %v547 = vunpack.c.l.b16 %v515
        %v548 = vunpack.c.l.b16 %v516
        %v549 = vunpack.c.l.b16 %v517
        %v550 = vunpack.c.l.b16 %v518
        %v551 = vunpack.c.l.b16 %v519
        %v552 = vunpack.c.l.b16 %v520
        %v553 = vpack.c.b16 %v538, %v537
        %v554 = vpack.c.b16 %v540, %v539
        %v555 = vpack.c.b16 %v542, %v541
        %v556 = vpack.c.b16 %v544, %v543
        %v557 = vpack.c.b16 %v546, %v545
        %v558 = vpack.c.b16 %v548, %v547
        %v559 = vpack.c.b16 %v550, %v549
        %v560 = vpack.c.b16 %v552, %v551
        %569 = vmatpush.bf16.msra.mxu0 %v560
        %570 = vmatpush.bf16.msra.mxu0 %v559
        %571 = vmatpush.bf16.msra.mxu0 %v558
        %572 = vmatpush.bf16.msra.mxu0 %v557
        %573 = vmatpush.bf16.msra.mxu0 %v556
        %574 = vmatpush.bf16.msra.mxu0 %v555
        %575 = vmatpush.bf16.msra.mxu0 %v554
        %576 = vmatpush.bf16.msra.mxu0 %v553
        %577 = vmatmul.bf16.gmra.mxu0 %v484
        %v578 = vpop.f32.mrf.mxu0
        %v579 = vadd.f32 0.0, %v578
        %v580 = vpop.f32.mrf.mxu0
        %581 = vdwg.mxu0
        %v584 = vunpack.c.l.b16 %v483
        %v585 = vunpack.c.l.b16 %v484
        %v586 = vpack.c.b16 %v585, %v584
        %v588 = vshrl.u32 %v586, 16
        %v590 = vrot.slane %v588, 3
        %v591 = vshll.u32 %v586, 16
        %v593 = vrot.slane %v591, 4
        %v594 = vor.u32 %v590, %v593
        %v612 = vunpack.c.l.b16 %v488
        %v613 = vunpack.c.l.b16 %v489
        %v614 = vunpack.c.l.b16 %v490
        %v615 = vunpack.c.l.b16 %v491
        %v616 = vunpack.c.l.b16 %v492
        %v617 = vunpack.c.l.b16 %v493
        %v618 = vunpack.c.l.b16 %v494
        %v619 = vunpack.c.l.b16 %v495
        %v620 = vunpack.c.l.b16 %v496
        %v621 = vunpack.c.l.b16 %v497
        %v622 = vunpack.c.l.b16 %v498
        %v623 = vunpack.c.l.b16 %v499
        %v624 = vunpack.c.l.b16 %v500
        %v625 = vunpack.c.l.b16 %v501
        %v626 = vunpack.c.l.b16 %v502
        %v627 = vunpack.c.l.b16 %v503
        %v628 = vpack.c.b16 %v613, %v612
        %v629 = vpack.c.b16 %v615, %v614
        %v630 = vpack.c.b16 %v617, %v616
        %v631 = vpack.c.b16 %v619, %v618
        %v632 = vpack.c.b16 %v621, %v620
        %v633 = vpack.c.b16 %v623, %v622
        %v634 = vpack.c.b16 %v625, %v624
        %v635 = vpack.c.b16 %v627, %v626
        %644 = vmatpush.bf16.msra.mxu0 %v635
        %645 = vmatpush.bf16.msra.mxu0 %v634
        %646 = vmatpush.bf16.msra.mxu0 %v633
        %647 = vmatpush.bf16.msra.mxu0 %v632
        %648 = vmatpush.bf16.msra.mxu0 %v631
        %649 = vmatpush.bf16.msra.mxu0 %v630
        %650 = vmatpush.bf16.msra.mxu0 %v629
        %651 = vmatpush.bf16.msra.mxu0 %v628
        %652 = vmatmul.bf16.gmra.mxu0 %v594
        %v653 = vpop.f32.mrf.mxu0
        %v654 = vadd.f32 %v579, %v653
        %v655 = vpop.f32.mrf.mxu0
        %656 = vdwg.mxu0
        %s657 = scalar_lea.vmem [#allocation4], 320
        %v658 = vld [vmem:[%s657] sm:$0xf]
        %v659 = vld [vmem:[%s657 + $0x4] sm:$0xf]
        %v660 = vld [vmem:[%s657 + $0x8] sm:$0xf]
        %v661 = vld [vmem:[%s657 + $0xc] sm:$0xf]
        %v662 = vld [vmem:[%s657 + $0x10] sm:$0xf]
        %v663 = vld [vmem:[%s657 + $0x14] sm:$0xf]
        %v664 = vld [vmem:[%s657 + $0x18] sm:$0xf]
        %v665 = vld [vmem:[%s657 + $0x1c] sm:$0xf]
        %v666 = vld [vmem:[%s657 + $0x20] sm:$0xf]
        %v667 = vld [vmem:[%s657 + $0x24] sm:$0xf]
        %v668 = vld [vmem:[%s657 + $0x28] sm:$0xf]
        %v669 = vld [vmem:[%s657 + $0x2c] sm:$0xf]
        %v670 = vld [vmem:[%s657 + $0x30] sm:$0xf]
        %v671 = vld [vmem:[%s657 + $0x34] sm:$0xf]
        %v672 = vld [vmem:[%s657 + $0x38] sm:$0xf]
        %v673 = vld [vmem:[%s657 + $0x3c] sm:$0xf]
        %v676 = vunpack.c.l.b16 %v485
        %v677 = vunpack.c.l.b16 %v486
        %v678 = vpack.c.b16 %v677, %v676
        %v680 = vshrl.u32 %v678, 16
        %v682 = vshll.u32 %v678, 16
        %v684 = vrot.slane %v682, 1
        %v685 = vor.u32 %v680, %v684
        %v703 = vunpack.c.l.b16 %v658
        %v704 = vunpack.c.l.b16 %v659
        %v705 = vunpack.c.l.b16 %v660
        %v706 = vunpack.c.l.b16 %v661
        %v707 = vunpack.c.l.b16 %v662
        %v708 = vunpack.c.l.b16 %v663
        %v709 = vunpack.c.l.b16 %v664
        %v710 = vunpack.c.l.b16 %v665
        %v711 = vunpack.c.l.b16 %v666
        %v712 = vunpack.c.l.b16 %v667
        %v713 = vunpack.c.l.b16 %v668
        %v714 = vunpack.c.l.b16 %v669
        %v715 = vunpack.c.l.b16 %v670
        %v716 = vunpack.c.l.b16 %v671
        %v717 = vunpack.c.l.b16 %v672
        %v718 = vunpack.c.l.b16 %v673
        %v719 = vpack.c.b16 %v704, %v703
        %v720 = vpack.c.b16 %v706, %v705
        %v721 = vpack.c.b16 %v708, %v707
        %v722 = vpack.c.b16 %v710, %v709
        %v723 = vpack.c.b16 %v712, %v711
        %v724 = vpack.c.b16 %v714, %v713
        %v725 = vpack.c.b16 %v716, %v715
        %v726 = vpack.c.b16 %v718, %v717
        %735 = vmatpush.bf16.msra.mxu0 %v726
        %736 = vmatpush.bf16.msra.mxu0 %v725
        %737 = vmatpush.bf16.msra.mxu0 %v724
        %738 = vmatpush.bf16.msra.mxu0 %v723
        %739 = vmatpush.bf16.msra.mxu0 %v722
        %740 = vmatpush.bf16.msra.mxu0 %v721
        %741 = vmatpush.bf16.msra.mxu0 %v720
        %742 = vmatpush.bf16.msra.mxu0 %v719
        %743 = vmatmul.bf16.gmra.mxu0 %v685
        %v744 = vpop.f32.mrf.mxu0
        %v745 = vadd.f32 0.0, %v744
        %v746 = vpop.f32.mrf.mxu0
        %747 = vdwg.mxu0
        %v748 = vadd.f32 %v654, %v745
        %s749 = scalar_lea.vmem %s2, 1
        %v750 = vld [vmem:[%s749] sm:$0x1]
        %v752 = vperm.slane %v750, 0
        %v754 = vadd.f32 %v748, %v752
        %v755 = vmax.f32 %v754, 0.0
        %v756 = vpack.c.bf16 %v755, %v755
        %757 = vst [vmem:[#allocation2 + $0x4] sm:$0xf] %v756
        %v758 = vld [vmem:[#allocation2] sm:$0x8]
        %v759 = vld [vmem:[#allocation2 + $0x4] sm:$0xf]
        %v760 = vld [vmem:[#allocation2 + $0x4] sm:$0xf]
        %v761 = vld [vmem:[#allocation2 + $0x8] sm:$0x1]
        %s762 = scalar_lea.vmem [#allocation4], 384
        %v763 = vld [vmem:[%s762] sm:$0xf]
        %v764 = vld [vmem:[%s762 + $0x4] sm:$0xf]
        %v765 = vld [vmem:[%s762 + $0x8] sm:$0xf]
        %v766 = vld [vmem:[%s762 + $0xc] sm:$0xf]
        %v767 = vld [vmem:[%s762 + $0x10] sm:$0xf]
        %v768 = vld [vmem:[%s762 + $0x14] sm:$0xf]
        %v769 = vld [vmem:[%s762 + $0x18] sm:$0xf]
        %v770 = vld [vmem:[%s762 + $0x1c] sm:$0xf]
        %v771 = vld [vmem:[%s762 + $0x20] sm:$0xf]
        %v772 = vld [vmem:[%s762 + $0x24] sm:$0xf]
        %v773 = vld [vmem:[%s762 + $0x28] sm:$0xf]
        %v774 = vld [vmem:[%s762 + $0x2c] sm:$0xf]
        %v775 = vld [vmem:[%s762 + $0x30] sm:$0xf]
        %v776 = vld [vmem:[%s762 + $0x34] sm:$0xf]
        %v777 = vld [vmem:[%s762 + $0x38] sm:$0xf]
        %v778 = vld [vmem:[%s762 + $0x3c] sm:$0xf]
        %s779 = scalar_lea.vmem [#allocation4], 448
        %v780 = vld [vmem:[%s779] sm:$0xf]
        %v781 = vld [vmem:[%s779 + $0x4] sm:$0xf]
        %v782 = vld [vmem:[%s779 + $0x8] sm:$0xf]
        %v783 = vld [vmem:[%s779 + $0xc] sm:$0xf]
        %v784 = vld [vmem:[%s779 + $0x10] sm:$0xf]
        %v785 = vld [vmem:[%s779 + $0x14] sm:$0xf]
        %v786 = vld [vmem:[%s779 + $0x18] sm:$0xf]
        %v787 = vld [vmem:[%s779 + $0x1c] sm:$0xf]
        %v788 = vld [vmem:[%s779 + $0x20] sm:$0xf]
        %v789 = vld [vmem:[%s779 + $0x24] sm:$0xf]
        %v790 = vld [vmem:[%s779 + $0x28] sm:$0xf]
        %v791 = vld [vmem:[%s779 + $0x2c] sm:$0xf]
        %v792 = vld [vmem:[%s779 + $0x30] sm:$0xf]
        %v793 = vld [vmem:[%s779 + $0x34] sm:$0xf]
        %v794 = vld [vmem:[%s779 + $0x38] sm:$0xf]
        %v795 = vld [vmem:[%s779 + $0x3c] sm:$0xf]
        %v812 = vunpack.c.l.b16 %v780
        %v813 = vunpack.c.l.b16 %v781
        %v814 = vunpack.c.l.b16 %v782
        %v815 = vunpack.c.l.b16 %v783
        %v816 = vunpack.c.l.b16 %v784
        %v817 = vunpack.c.l.b16 %v785
        %v818 = vunpack.c.l.b16 %v786
        %v819 = vunpack.c.l.b16 %v787
        %v820 = vunpack.c.l.b16 %v788
        %v821 = vunpack.c.l.b16 %v789
        %v822 = vunpack.c.l.b16 %v790
        %v823 = vunpack.c.l.b16 %v791
        %v824 = vunpack.c.l.b16 %v792
        %v825 = vunpack.c.l.b16 %v793
        %v826 = vunpack.c.l.b16 %v794
        %v827 = vunpack.c.l.b16 %v795
        %v828 = vpack.c.b16 %v813, %v812
        %v829 = vpack.c.b16 %v815, %v814
        %v830 = vpack.c.b16 %v817, %v816
        %v831 = vpack.c.b16 %v819, %v818
        %v832 = vpack.c.b16 %v821, %v820
        %v833 = vpack.c.b16 %v823, %v822
        %v834 = vpack.c.b16 %v825, %v824
        %v835 = vpack.c.b16 %v827, %v826
        %844 = vmatpush.bf16.msra.mxu0 %v835
        %845 = vmatpush.bf16.msra.mxu0 %v834
        %846 = vmatpush.bf16.msra.mxu0 %v833
        %847 = vmatpush.bf16.msra.mxu0 %v832
        %848 = vmatpush.bf16.msra.mxu0 %v831
        %849 = vmatpush.bf16.msra.mxu0 %v830
        %850 = vmatpush.bf16.msra.mxu0 %v829
        %851 = vmatpush.bf16.msra.mxu0 %v828
        %852 = vmatmul.bf16.gmra.mxu0 %v759
        %v853 = vpop.f32.mrf.mxu0
        %v854 = vadd.f32 0.0, %v853
        %v855 = vpop.f32.mrf.mxu0
        %856 = vdwg.mxu0
        %v859 = vunpack.c.l.b16 %v758
        %v860 = vunpack.c.l.b16 %v759
        %v861 = vpack.c.b16 %v860, %v859
        %v863 = vshrl.u32 %v861, 16
        %v865 = vrot.slane %v863, 3
        %v866 = vshll.u32 %v861, 16
        %v868 = vrot.slane %v866, 4
        %v869 = vor.u32 %v865, %v868
        %v887 = vunpack.c.l.b16 %v763
        %v888 = vunpack.c.l.b16 %v764
        %v889 = vunpack.c.l.b16 %v765
        %v890 = vunpack.c.l.b16 %v766
        %v891 = vunpack.c.l.b16 %v767
        %v892 = vunpack.c.l.b16 %v768
        %v893 = vunpack.c.l.b16 %v769
        %v894 = vunpack.c.l.b16 %v770
        %v895 = vunpack.c.l.b16 %v771
        %v896 = vunpack.c.l.b16 %v772
        %v897 = vunpack.c.l.b16 %v773
        %v898 = vunpack.c.l.b16 %v774
        %v899 = vunpack.c.l.b16 %v775
        %v900 = vunpack.c.l.b16 %v776
        %v901 = vunpack.c.l.b16 %v777
        %v902 = vunpack.c.l.b16 %v778
        %v903 = vpack.c.b16 %v888, %v887
        %v904 = vpack.c.b16 %v890, %v889
        %v905 = vpack.c.b16 %v892, %v891
        %v906 = vpack.c.b16 %v894, %v893
        %v907 = vpack.c.b16 %v896, %v895
        %v908 = vpack.c.b16 %v898, %v897
        %v909 = vpack.c.b16 %v900, %v899
        %v910 = vpack.c.b16 %v902, %v901
        %919 = vmatpush.bf16.msra.mxu0 %v910
        %920 = vmatpush.bf16.msra.mxu0 %v909
        %921 = vmatpush.bf16.msra.mxu0 %v908
        %922 = vmatpush.bf16.msra.mxu0 %v907
        %923 = vmatpush.bf16.msra.mxu0 %v906
        %924 = vmatpush.bf16.msra.mxu0 %v905
        %925 = vmatpush.bf16.msra.mxu0 %v904
        %926 = vmatpush.bf16.msra.mxu0 %v903
        %927 = vmatmul.bf16.gmra.mxu0 %v869
        %v928 = vpop.f32.mrf.mxu0
        %v929 = vadd.f32 %v854, %v928
        %v930 = vpop.f32.mrf.mxu0
        %931 = vdwg.mxu0
        %s932 = scalar_lea.vmem [#allocation4], 512
        %v933 = vld [vmem:[%s932] sm:$0xf]
        %v934 = vld [vmem:[%s932 + $0x4] sm:$0xf]
        %v935 = vld [vmem:[%s932 + $0x8] sm:$0xf]
        %v936 = vld [vmem:[%s932 + $0xc] sm:$0xf]
        %v937 = vld [vmem:[%s932 + $0x10] sm:$0xf]
        %v938 = vld [vmem:[%s932 + $0x14] sm:$0xf]
        %v939 = vld [vmem:[%s932 + $0x18] sm:$0xf]
        %v940 = vld [vmem:[%s932 + $0x1c] sm:$0xf]
        %v941 = vld [vmem:[%s932 + $0x20] sm:$0xf]
        %v942 = vld [vmem:[%s932 + $0x24] sm:$0xf]
        %v943 = vld [vmem:[%s932 + $0x28] sm:$0xf]
        %v944 = vld [vmem:[%s932 + $0x2c] sm:$0xf]
        %v945 = vld [vmem:[%s932 + $0x30] sm:$0xf]
        %v946 = vld [vmem:[%s932 + $0x34] sm:$0xf]
        %v947 = vld [vmem:[%s932 + $0x38] sm:$0xf]
        %v948 = vld [vmem:[%s932 + $0x3c] sm:$0xf]
        %v951 = vunpack.c.l.b16 %v760
        %v952 = vunpack.c.l.b16 %v761
        %v953 = vpack.c.b16 %v952, %v951
        %v955 = vshrl.u32 %v953, 16
        %v957 = vshll.u32 %v953, 16
        %v959 = vrot.slane %v957, 1
        %v960 = vor.u32 %v955, %v959
        %v978 = vunpack.c.l.b16 %v933
        %v979 = vunpack.c.l.b16 %v934
        %v980 = vunpack.c.l.b16 %v935
        %v981 = vunpack.c.l.b16 %v936
        %v982 = vunpack.c.l.b16 %v937
        %v983 = vunpack.c.l.b16 %v938
        %v984 = vunpack.c.l.b16 %v939
        %v985 = vunpack.c.l.b16 %v940
        %v986 = vunpack.c.l.b16 %v941
        %v987 = vunpack.c.l.b16 %v942
        %v988 = vunpack.c.l.b16 %v943
        %v989 = vunpack.c.l.b16 %v944
        %v990 = vunpack.c.l.b16 %v945
        %v991 = vunpack.c.l.b16 %v946
        %v992 = vunpack.c.l.b16 %v947
        %v993 = vunpack.c.l.b16 %v948
        %v994 = vpack.c.b16 %v979, %v978
        %v995 = vpack.c.b16 %v981, %v980
        %v996 = vpack.c.b16 %v983, %v982
        %v997 = vpack.c.b16 %v985, %v984
        %v998 = vpack.c.b16 %v987, %v986
        %v999 = vpack.c.b16 %v989, %v988
        %v1000 = vpack.c.b16 %v991, %v990
        %v1001 = vpack.c.b16 %v993, %v992
        %1010 = vmatpush.bf16.msra.mxu0 %v1001
        %1011 = vmatpush.bf16.msra.mxu0 %v1000
        %1012 = vmatpush.bf16.msra.mxu0 %v999
        %1013 = vmatpush.bf16.msra.mxu0 %v998
        %1014 = vmatpush.bf16.msra.mxu0 %v997
        %1015 = vmatpush.bf16.msra.mxu0 %v996
        %1016 = vmatpush.bf16.msra.mxu0 %v995
        %1017 = vmatpush.bf16.msra.mxu0 %v994
        %1018 = vmatmul.bf16.gmra.mxu0 %v960
        %v1019 = vpop.f32.mrf.mxu0
        %v1020 = vadd.f32 0.0, %v1019
        %v1021 = vpop.f32.mrf.mxu0
        %1022 = vdwg.mxu0
        %v1023 = vadd.f32 %v929, %v1020
        %s1024 = scalar_lea.vmem %s2, 2
        %v1025 = vld [vmem:[%s1024] sm:$0x1]
        %v1027 = vperm.slane %v1025, 0
        %v1029 = vadd.f32 %v1023, %v1027
        %1030 = vst [vmem:[%s180] sm:$0xff] %v1029
        %s1031 = sand.u32 %s94, 1
        %s1032 = scalar_lea.sflag [#allocation6], %s1031
        %s1033 = sand.u32 %s94, 1
        %s1034 = smul.addr %s1033, 8
        %s1035 = scalar_lea.vmem [#allocation7], %s1034
        // Predicated region
        $region37: #{tpu_custom_call.1} parent=31 // pred_check
          %p1036 = pneg %p104
        $region38: #{tpu_custom_call.1} parent=31 // pred_check_branch
          %1038 = sbr.rel (%p1036) target = $region40
        $region39: #{tpu_custom_call.1} parent=31 // pred_region
          %1040 = vsyncadd %s1032, 0
          %s1041 = smul.addr %s18, 8
          %s1042 = scalar_lea.hbm %s3, %s1041
          %s1044 = sshll.u32 %s1035, 4
          %s1045 = int_to_ptr.vmem [resolvable:$true] %s1044
          %s1046 = sshll.u32 %s1042, 4
          %s1047 = int_to_ptr.hbm [resolvable:$true] %s1046
          %1049 = dma.vmem_to_hbm [thread:$0]  %s1045, 128, %s1047, %s1032
        $region40: #{tpu_custom_call.1} parent=31 // pred_fallthru
          _
      $region32: #{tpu_custom_call.1} parent=5 // pred_fallthru
        _
      %p1050 = scmp.le.s32.totalorder 2, %s13
      // Predicated region
      $region41: #{tpu_custom_call.1} parent=5 // pred_check
        %p1051 = pneg %p1050
      $region42: #{tpu_custom_call.1} parent=5 // pred_check_branch
        %1053 = sbr.rel (%p1051) target = $region44
      $region43: #{tpu_custom_call.1} parent=5 // pred_region
        %s1054 = ssub.s32 %s13, 2
        // Predicated region
        $region45: #{tpu_custom_call.1} parent=43 // pred_check
          %p1055 = pneg %p110
        $region46: #{tpu_custom_call.1} parent=43 // pred_check_branch
          %1057 = sbr.rel (%p1055) target = $region48
        $region47: #{tpu_custom_call.1} parent=43 // pred_region
          %s1058 = sand.u32 %s95, 1
          %s1059 = scalar_lea.sflag [#allocation6], %s1058
          %s1060 = sand.u32 %s95, 1
          %s1061 = smul.addr %s1060, 8
          %s1062 = scalar_lea.vmem [#allocation7], %s1061
          %1064 = dma.done %s1059, 128
        $region48: #{tpu_custom_call.1} parent=43 // pred_fallthru
          _
      $region44: #{tpu_custom_call.1} parent=5 // pred_fallthru
        _
    $region6: #{tpu_custom_call.1} parent=1 // loop_footer
      %s17 = sadd.s32 1, %s13
    $region7: #{tpu_custom_call.1} parent=1 // loop_footer_branch
      %12 = sbr.rel target = $region3
    $region8: #{tpu_custom_call.1} parent=1 // loop_exit
      _
    %1065 = vsyncpa [#allocation5], 1
    %s1066 = scalar_lea.sflag [#allocation5], 1
    %1067 = vsyncpa %s1066, 1
    %1068 = vsyncpa [#allocation6], 1
    %s1069 = scalar_lea.sflag [#allocation6], 1
    %1070 = vsyncpa %s1069, 1

</llo_original>
